<compile_context>
chip_gen: v6e
topology: v6e:2x2x1
jax: 0.10.0
libtpu: 0.0.40
codegen_flags: <defaults>
</compile_context>

<pallas_src>
import jax
import jax.numpy as jnp
from jax.experimental import pallas as pl
from jax.experimental.pallas import tpu as pltpu


def _round_up(x, m):
    return (x + m - 1) // m * m


def _make_kernel(H, O):
    HO = H + O

    def kernel(x_ref, wx_ref, wh_ref, b_ref, out_ref):
        t = pl.program_id(0)
        nt = pl.num_programs(0)

        # t == 0: zero the resident slab so the hidden carry starts at 0
        # (equivalent to getHidden()).
        @pl.when(t == 0)
        def _():
            out_ref[...] = jnp.zeros_like(out_ref)

        x = x_ref[0].astype(jnp.bfloat16)            # (B_pad, I)
        h = out_ref[:, :H].astype(jnp.bfloat16)      # previous hidden (B_pad, H)

        # combined @ [W_ih | W_io] done as x@Wx + h@Wh (no concat needed);
        # bf16 MXU operands, float32 accumulation, float32 bias.
        y = (jnp.dot(x, wx_ref[...], preferred_element_type=jnp.float32)
             + jnp.dot(h, wh_ref[...], preferred_element_type=jnp.float32)
             + b_ref[...])                           # (B_pad, P) float32

        # Lane-dense store; columns [0:H] are the hidden-state carry for t+1.
        out_ref[...] = y

        # Final step only: numerically stable LogSoftmax over the real logit
        # lanes [H, H+O); padded lanes are masked to -inf for the normalizer.
        @pl.when(t == nt - 1)
        def _():
            lane = jax.lax.broadcasted_iota(jnp.int32, y.shape, 1)
            logit_mask = (lane >= H) & (lane < HO)
            masked = jnp.where(logit_mask, y, -jnp.inf)
            m = jnp.max(masked, axis=1, keepdims=True)
            shifted = masked - m
            lse = jnp.log(jnp.sum(jnp.exp(shifted), axis=1, keepdims=True))
            # hidden columns keep the raw new hidden; logit columns -> log-probs
            out_ref[...] = jnp.where(logit_mask, shifted - lse, y)

    return kernel


def rnn_predict(inputs, w_h, b_h, w_o, b_o):
    """Run the whole sequence (RNN.predict) in one fused Pallas call.

    inputs : (T, B, inputSize) float32
    w_h    : (inputSize+hiddenSize, hiddenSize)   b_h : (1, hiddenSize)
    w_o    : (inputSize+hiddenSize, outputSize)   b_o : (1, outputSize)
    returns (log_probs (B, outputSize), hidden (B, hiddenSize)) after the
    final time step.
    """
    T, B, I = inputs.shape
    H = w_h.shape[1]
    O = w_o.shape[1]
    HO = H + O
    P = _round_up(HO, 128)        # lane-dense slab width
    B_pad = _round_up(B, 8)       # sublane-dense batch

    # Fuse the two Linears along the output axis -> one (I+H, P) slab, then
    # split its rows into the x-part and the h-part (replaces torch.cat).
    w_all = jnp.concatenate([w_h, w_o], axis=1)                     # (I+H, H+O)
    w_all = jnp.pad(w_all, ((0, 0), (0, P - HO)))
    wx = w_all[:I].astype(jnp.bfloat16)                             # (I, P)
    wh = w_all[I:].astype(jnp.bfloat16)                             # (H, P)
    b_all = jnp.pad(
        jnp.concatenate([b_h.reshape(1, H), b_o.reshape(1, O)], axis=1),
        ((0, 0), (0, P - HO))).astype(jnp.float32)                  # (1, P)

    x = jnp.pad(inputs.astype(jnp.float32),
                ((0, 0), (0, B_pad - B), (0, 0)))                   # (T, B_pad, I)

    kernel = _make_kernel(H, O)

    out = pl.pallas_call(
        kernel,
        out_shape=jax.ShapeDtypeStruct((B_pad, P), jnp.float32),
        grid_spec=pltpu.PrefetchScalarGridSpec(
            num_scalar_prefetch=0,
            grid=(T,),
            in_specs=[
                pl.BlockSpec((1, B_pad, I), lambda t: (t, 0, 0)),   # x_t per step
                pl.BlockSpec((I, P), lambda t: (0, 0)),             # resident Wx
                pl.BlockSpec((H, P), lambda t: (0, 0)),             # resident Wh
                pl.BlockSpec((1, P), lambda t: (0, 0)),             # resident bias
            ],
            out_specs=pl.BlockSpec((B_pad, P), lambda t: (0, 0)),   # resident slab
        ),
        compiler_params=pltpu.CompilerParams(
            # The time axis carries the hidden state -> must stay sequential.
            dimension_semantics=("arbitrary",),
        ),
    )(x, wx, wh, b_all)

    hidden = out[:B, :H]
    log_probs = out[:B, H:HO]
    return log_probs, hidden


rnn_predict_jit = jax.jit(rnn_predict)


def _reference_predict(inputs, w_h, b_h, w_o, b_o):
    """Pure-JAX mirror of the kernel math (bf16 MXU operands, f32 accum)."""
    T, B, _ = inputs.shape
    H = w_h.shape[1]
    h = jnp.zeros((B, H), jnp.float32)
    wh_b = w_h.astype(jnp.bfloat16)
    wo_b = w_o.astype(jnp.bfloat16)
    out = None
    for t in range(T):
        comb = jnp.concatenate([inputs[t], h], axis=1).astype(jnp.bfloat16)
        h = (jnp.dot(comb, wh_b, preferred_element_type=jnp.float32)
             + b_h.astype(jnp.float32))
        logits = (jnp.dot(comb, wo_b, preferred_element_type=jnp.float32)
                  + b_o.astype(jnp.float32))
        out = jax.nn.log_softmax(logits, axis=1)
    return out, h


def init_params(key, input_size, hidden_size, output_size):
    """Deterministic init mimicking nn.Linear's U(-1/sqrt(fan_in), 1/sqrt(fan_in))."""
    k1, k2, k3, k4 = jax.random.split(key, 4)
    fan_in = input_size + hidden_size
    bound = 1.0 / jnp.sqrt(jnp.float32(fan_in))
    w_h = jax.random.uniform(k1, (fan_in, hidden_size), jnp.float32, -bound, bound)
    b_h = jax.random.uniform(k2, (1, hidden_size), jnp.float32, -bound, bound)
    w_o = jax.random.uniform(k3, (fan_in, output_size), jnp.float32, -bound, bound)
    b_o = jax.random.uniform(k4, (1, output_size), jnp.float32, -bound, bound)
    return w_h, b_h, w_o, b_o


if __name__ == "__main__":
    # TODO(synk): training pieces (NLLLoss, SGD+momentum, backward) are not
    # part of the forward pass and are not translated.
    key = jax.random.PRNGKey(0)
    k_in, k_param = jax.random.split(key)

    batch = 2
    input_size = 16
    hidden_size = 32
    output_size = 8
    seq_len = 4

    w_h, b_h, w_o, b_o = init_params(k_param, input_size, hidden_size, output_size)
    inputs = jax.random.normal(k_in, (seq_len, batch, input_size), jnp.float32)

    log_probs, hidden = rnn_predict_jit(inputs, w_h, b_h, w_o, b_o)
    log_probs = jax.block_until_ready(log_probs)
    hidden = jax.block_until_ready(hidden)

    assert log_probs.shape == (batch, output_size)
    assert hidden.shape == (batch, hidden_size)

    # LogSoftmax rows must sum (in prob space) to ~1.
    probs_sum = jnp.sum(jnp.exp(log_probs), axis=1)
    assert jnp.allclose(probs_sum, jnp.ones_like(probs_sum), atol=1e-5)

    # Compare against a pure-JAX mirror of the same math.
    ref_out, ref_hid = _reference_predict(inputs, w_h, b_h, w_o, b_o)
    assert jnp.allclose(log_probs, ref_out, atol=1e-3, rtol=1e-3)
    assert jnp.allclose(hidden, ref_hid, atol=1e-3, rtol=1e-3)

    print("KERNEL_OK")
</pallas_src>

<mosaic_0001>
module attributes {stable_mosaic.version = 11 : i64} {
  func.func @kernel(%arg0: i32, %arg1: memref<1x8x16xf32, #tpu.memory_space<vmem>>, %arg2: memref<16x128xbf16, #tpu.memory_space<vmem>>, %arg3: memref<32x128xbf16, #tpu.memory_space<vmem>>, %arg4: memref<1x128xf32, #tpu.memory_space<vmem>>, %arg5: memref<8x128xf32, #tpu.memory_space<vmem>>) attributes {dimension_semantics = [#tpu.dimension_semantics<arbitrary>], iteration_bounds = array<i64: 4>, scalar_prefetch = 0 : i64, scratch_operands = 0 : i64, tpu.core_type = #tpu.core_type<tc>, window_params = [{transform_indices = @transform_0, window_bounds = array<i64: 1, 8, 16>}, {pipeline_mode = #tpu.pipeline_mode<synchronous>, transform_indices = @transform_1, window_bounds = array<i64: 16, 128>}, {pipeline_mode = #tpu.pipeline_mode<synchronous>, transform_indices = @transform_2, window_bounds = array<i64: 32, 128>}, {pipeline_mode = #tpu.pipeline_mode<synchronous>, transform_indices = @transform_3, window_bounds = array<i64: 1, 128>}, {pipeline_mode = #tpu.pipeline_mode<synchronous>, transform_indices = @transform_4, window_bounds = array<i64: 8, 128>}]} {
    %c0_i32 = arith.constant 0 : i32
    %0 = arith.cmpi eq, %arg0, %c0_i32 : i32
    %1 = arith.extui %0 : i1 to i32
    %c0_i32_0 = arith.constant 0 : i32
    %2 = arith.cmpi ne, %1, %c0_i32_0 : i32
    scf.if %2 {
      %cst_15 = arith.constant 0.000000e+00 : f32
      %20 = vector.broadcast %cst_15 : f32 to vector<8x128xf32>
      %c0_16 = arith.constant 0 : index
      %c0_17 = arith.constant 0 : index
      %21 = vector.load %arg5[%c0_16, %c0_17] : memref<8x128xf32, #tpu.memory_space<vmem>>, vector<8x128xf32>
      tpu.vector_store %arg5[%c0_16, %c0_17], %20 {strides = array<i32>} : memref<8x128xf32, #tpu.memory_space<vmem>>, vector<8x128xf32>,
    } else {
    }
    %c0 = arith.constant 0 : index
    %c0_1 = arith.constant 0 : index
    %c0_2 = arith.constant 0 : index
    %3 = vector.load %arg1[%c0, %c0_1, %c0_2] : memref<1x8x16xf32, #tpu.memory_space<vmem>>, vector<1x8x16xf32>
    %4 = vector.shape_cast %3 : vector<1x8x16xf32> to vector<8x16xf32>
    %5 = arith.truncf %4 : vector<8x16xf32> to vector<8x16xbf16>
    %c0_3 = arith.constant 0 : index
    %c0_4 = arith.constant 0 : index
    %6 = vector.load %arg5[%c0_3, %c0_4] : memref<8x128xf32, #tpu.memory_space<vmem>>, vector<8x32xf32>
    %7 = arith.truncf %6 : vector<8x32xf32> to vector<8x32xbf16>
    %c0_5 = arith.constant 0 : index
    %c0_6 = arith.constant 0 : index
    %8 = vector.load %arg2[%c0_5, %c0_6] : memref<16x128xbf16, #tpu.memory_space<vmem>>, vector<16x128xbf16>
    %cst = arith.constant dense<0.000000e+00> : vector<8x128xf32>
    %9 = tpu.matmul %5, %8, %cst {dimension_numbers = #tpu.dot_dimension_numbers<[1], [0], [0], [1], [0, 0, 1, 1], [], []>} : vector<8x16xbf16>, vector<16x128xbf16>, vector<8x128xf32> -> vector<8x128xf32>
    %c0_7 = arith.constant 0 : index
    %c0_8 = arith.constant 0 : index
    %10 = vector.load %arg3[%c0_7, %c0_8] : memref<32x128xbf16, #tpu.memory_space<vmem>>, vector<32x128xbf16>
    %cst_9 = arith.constant dense<0.000000e+00> : vector<8x128xf32>
    %11 = tpu.matmul %7, %10, %cst_9 {dimension_numbers = #tpu.dot_dimension_numbers<[1], [0], [0], [1], [0, 0, 1, 1], [], []>} : vector<8x32xbf16>, vector<32x128xbf16>, vector<8x128xf32> -> vector<8x128xf32>
    %12 = arith.addf %9, %11 : vector<8x128xf32>
    %c0_10 = arith.constant 0 : index
    %c0_11 = arith.constant 0 : index
    %13 = vector.load %arg4[%c0_10, %c0_11] : memref<1x128xf32, #tpu.memory_space<vmem>>, vector<1x128xf32>
    %14 = vector.broadcast %13 : vector<1x128xf32> to vector<8x128xf32>
    %15 = arith.addf %12, %14 : vector<8x128xf32>
    %c0_12 = arith.constant 0 : index
    %c0_13 = arith.constant 0 : index
    %16 = vector.load %arg5[%c0_12, %c0_13] : memref<8x128xf32, #tpu.memory_space<vmem>>, vector<8x128xf32>
    tpu.vector_store %arg5[%c0_12, %c0_13], %15 {strides = array<i32>} : memref<8x128xf32, #tpu.memory_space<vmem>>, vector<8x128xf32>,
    %c3_i32 = arith.constant 3 : i32
    %17 = arith.cmpi eq, %arg0, %c3_i32 : i32
    %18 = arith.extui %17 : i1 to i32
    %c0_i32_14 = arith.constant 0 : i32
    %19 = arith.cmpi ne, %18, %c0_i32_14 : i32
    scf.if %19 {
      %20 = tpu.iota {dimensions = array<i32: 1>} : vector<8x128xi32>
      %c32_i32 = arith.constant 32 : i32
      %21 = vector.broadcast %c32_i32 : i32 to vector<8x128xi32>
      %22 = arith.cmpi sge, %20, %21 : vector<8x128xi32>
      %c40_i32 = arith.constant 40 : i32
      %23 = vector.broadcast %c40_i32 : i32 to vector<8x128xi32>
      %24 = arith.cmpi slt, %20, %23 : vector<8x128xi32>
      %25 = arith.andi %22, %24 : vector<8x128xi1>
      %cst_15 = arith.constant 0xFF800000 : f32
      %26 = vector.broadcast %cst_15 : f32 to vector<8x128xf32>
      %27 = arith.select %25, %15, %26 : vector<8x128xi1>, vector<8x128xf32>
      %cst_16 = arith.constant dense<0xFF800000> : vector<8xf32>
      %28 = vector.multi_reduction <maximumf>, %27, %cst_16 [1] : vector<8x128xf32> to vector<8xf32>
      %29 = vector.shape_cast %28 : vector<8xf32> to vector<8x1xf32>
      %30 = vector.broadcast %29 : vector<8x1xf32> to vector<8x128xf32>
      %31 = arith.subf %27, %30 : vector<8x128xf32>
      %32 = math.exp %31 : vector<8x128xf32>
      %cst_17 = arith.constant dense<0.000000e+00> : vector<8xf32>
      %33 = vector.multi_reduction <add>, %32, %cst_17 [1] : vector<8x128xf32> to vector<8xf32>
      %34 = vector.shape_cast %33 : vector<8xf32> to vector<8x1xf32>
      %35 = math.log %34 : vector<8x1xf32>
      %36 = vector.broadcast %35 : vector<8x1xf32> to vector<8x128xf32>
      %37 = arith.subf %31, %36 : vector<8x128xf32>
      %38 = arith.select %25, %37, %15 : vector<8x128xi1>, vector<8x128xf32>
      %c0_18 = arith.constant 0 : index
      %c0_19 = arith.constant 0 : index
      %39 = vector.load %arg5[%c0_18, %c0_19] : memref<8x128xf32, #tpu.memory_space<vmem>>, vector<8x128xf32>
      tpu.vector_store %arg5[%c0_18, %c0_19], %38 {strides = array<i32>} : memref<8x128xf32, #tpu.memory_space<vmem>>, vector<8x128xf32>,
    } else {
    }
    return
  }
  func.func @transform_0(%arg0: i32) -> (i32, i32, i32) {
    %c0_i32 = arith.constant 0 : i32
    %c0_i32_0 = arith.constant 0 : i32
    %c0_i32_1 = arith.constant 0 : i32
    return %arg0, %c0_i32, %c0_i32_0 : i32, i32, i32
  }
  func.func @transform_1(%arg0: i32) -> (i32, i32) {
    %c0_i32 = arith.constant 0 : i32
    %c0_i32_0 = arith.constant 0 : i32
    %c0_i32_1 = arith.constant 0 : i32
    return %c0_i32, %c0_i32_0 : i32, i32
  }
  func.func @transform_2(%arg0: i32) -> (i32, i32) {
    %c0_i32 = arith.constant 0 : i32
    %c0_i32_0 = arith.constant 0 : i32
    %c0_i32_1 = arith.constant 0 : i32
    return %c0_i32, %c0_i32_0 : i32, i32
  }
  func.func @transform_3(%arg0: i32) -> (i32, i32) {
    %c0_i32 = arith.constant 0 : i32
    %c0_i32_0 = arith.constant 0 : i32
    %c0_i32_1 = arith.constant 0 : i32
    return %c0_i32, %c0_i32_0 : i32, i32
  }
  func.func @transform_4(%arg0: i32) -> (i32, i32) {
    %c0_i32 = arith.constant 0 : i32
    %c0_i32_0 = arith.constant 0 : i32
    %c0_i32_1 = arith.constant 0 : i32
    return %c0_i32, %c0_i32_0 : i32, i32
  }
}

</mosaic_0001>

<llo_original>
// kernel: rnn_predict.1
$region0: #{rnn_predict.1}
  #allocation0 [shape = 'u32[]', space=smem, size = 0x4, offset = 0x4, fixed_abs, tag = 'smem constant byte address 0x4 - core index']
  #allocation1 [shape = 'u32[144,128]{1,0:T(1,128)}', space=vmem, size = 0x12000, scoped, tag = 'internal scratch']
  %s0 = inlined_call_operand.vmem [shape: f32[4,8,16], index: 0, kind: input, shape index: {}]
  %s1 = inlined_call_operand.vmem [shape: bf16[16,128], index: 1, kind: input, shape index: {}]
  %s2 = inlined_call_operand.vmem [shape: bf16[32,128], index: 2, kind: input, shape index: {}]
  %s3 = inlined_call_operand.vmem [shape: f32[1,128], index: 3, kind: input, shape index: {}]
  %s4 = inlined_call_operand.vmem [shape: f32[8,128], index: 4, kind: output, shape index: {}]
  %s5 = sld [smem:[#allocation0]]
  $region57: #{rnn_predict.1} parent=0
    _
  %s7 = ssub.s32 1, %s5
  %s8 = scalar_select 0, %s7, %s5
  loop: start=0, step=1, limit=6
  $region2: #{rnn_predict.1} parent=0 // loop_pre_header
    _
  $region3: #{rnn_predict.1} parent=0 // loop_header
    %s10 = sphi 0, %s14
    %p11 = scmp.ge.s32.totalorder %s10, 6
    %s20 = sphi 0, %s22
    %s23 = sphi 0, %s20
    %s24 = sphi 0, %s23
    %s40 = sphi 0, %s24
    %s44 = sphi 0, %s44
    %s46 = sphi 0, %s44
    %s47 = sphi 0, %s46
    %s61 = sphi 0, %s47
    %s65 = sphi 0, %s65
    %s67 = sphi 0, %s65
    %s68 = sphi 0, %s67
    %s82 = sphi 0, %s68
    %s86 = sphi 0, %s86
    %s88 = sphi 0, %s86
    %s89 = sphi 0, %s88
    %s103 = sphi 0, %s89
    %s107 = sphi 0, %s107
    %s109 = sphi 0, %s107
    %s110 = sphi 0, %s109
    %s124 = sphi 0, %s110
  $region4: #{rnn_predict.1} parent=0 // loop_header_branch
    %13 = sbr.rel (%p11) target = $region8
  $region5: #{rnn_predict.1} parent=0 // loop_body
    %s15 = ssub.s32 %s10, 1
    %s16 = ssub.s32 %s10, 2
    %s17 = sadd.s32 %s10, 1
    %s18 = ssub.s32 %s10, %s17
    %p19 = scmp.eq.s32.totalorder %s18, 0
    %s21 = sadd.s32 %s20, 1
    %s22 = scalar_select %p19, %s20, %s21
    %p25 = pneg %p19
    %p26 = scmp.eq.s32.totalorder %s10, 3
    %p27 = por %p25, %p26
    %p28 = scmp.ne.s32.totalorder %s20, %s23
    %p29 = scmp.eq.s32.totalorder %s10, 0
    %p30 = por %p28, %p29
    %p31 = scmp.ne.s32.totalorder %s20, %s23
    %p32 = scmp.eq.s32.totalorder %s15, 3
    %p33 = por %p31, %p32
    %p34 = scmp.ne.s32.totalorder %s23, %s24
    %p35 = scmp.eq.s32.totalorder %s15, 0
    %p36 = por %p34, %p35
    %p37 = scmp.ne.s32.totalorder %s23, %s24
    %p38 = scmp.eq.s32.totalorder %s16, 3
    %p39 = por %p37, %p38
    %p41 = scmp.ne.s32.totalorder %s24, %s40
    %p42 = scmp.eq.s32.totalorder %s16, 0
    %p43 = por %p41, %p42
    %s45 = sadd.s32 %s44, 1
    %p48 = scmp.eq.s32.totalorder %s10, 3
    %p49 = scmp.ne.s32.totalorder %s44, %s46
    %p50 = scmp.eq.s32.totalorder %s10, 0
    %p51 = por %p49, %p50
    %p52 = scmp.ne.s32.totalorder %s44, %s46
    %p53 = scmp.eq.s32.totalorder %s15, 3
    %p54 = por %p52, %p53
    %p55 = scmp.ne.s32.totalorder %s46, %s47
    %p56 = scmp.eq.s32.totalorder %s15, 0
    %p57 = por %p55, %p56
    %p58 = scmp.ne.s32.totalorder %s46, %s47
    %p59 = scmp.eq.s32.totalorder %s16, 3
    %p60 = por %p58, %p59
    %p62 = scmp.ne.s32.totalorder %s47, %s61
    %p63 = scmp.eq.s32.totalorder %s16, 0
    %p64 = por %p62, %p63
    %s66 = sadd.s32 %s65, 1
    %p69 = scmp.eq.s32.totalorder %s10, 3
    %p70 = scmp.ne.s32.totalorder %s65, %s67
    %p71 = scmp.eq.s32.totalorder %s10, 0
    %p72 = por %p70, %p71
    %p73 = scmp.ne.s32.totalorder %s65, %s67
    %p74 = scmp.eq.s32.totalorder %s15, 3
    %p75 = por %p73, %p74
    %p76 = scmp.ne.s32.totalorder %s67, %s68
    %p77 = scmp.eq.s32.totalorder %s15, 0
    %p78 = por %p76, %p77
    %p79 = scmp.ne.s32.totalorder %s67, %s68
    %p80 = scmp.eq.s32.totalorder %s16, 3
    %p81 = por %p79, %p80
    %p83 = scmp.ne.s32.totalorder %s68, %s82
    %p84 = scmp.eq.s32.totalorder %s16, 0
    %p85 = por %p83, %p84
    %s87 = sadd.s32 %s86, 1
    %p90 = scmp.eq.s32.totalorder %s10, 3
    %p91 = scmp.ne.s32.totalorder %s86, %s88
    %p92 = scmp.eq.s32.totalorder %s10, 0
    %p93 = por %p91, %p92
    %p94 = scmp.ne.s32.totalorder %s86, %s88
    %p95 = scmp.eq.s32.totalorder %s15, 3
    %p96 = por %p94, %p95
    %p97 = scmp.ne.s32.totalorder %s88, %s89
    %p98 = scmp.eq.s32.totalorder %s15, 0
    %p99 = por %p97, %p98
    %p100 = scmp.ne.s32.totalorder %s88, %s89
    %p101 = scmp.eq.s32.totalorder %s16, 3
    %p102 = por %p100, %p101
    %p104 = scmp.ne.s32.totalorder %s89, %s103
    %p105 = scmp.eq.s32.totalorder %s16, 0
    %p106 = por %p104, %p105
    %s108 = sadd.s32 %s107, 1
    %p111 = scmp.eq.s32.totalorder %s10, 3
    %p112 = scmp.ne.s32.totalorder %s107, %s109
    %p113 = scmp.eq.s32.totalorder %s10, 0
    %p114 = por %p112, %p113
    %p115 = scmp.ne.s32.totalorder %s107, %s109
    %p116 = scmp.eq.s32.totalorder %s15, 3
    %p117 = por %p115, %p116
    %p118 = scmp.ne.s32.totalorder %s109, %s110
    %p119 = scmp.eq.s32.totalorder %s15, 0
    %p120 = por %p118, %p119
    %p121 = scmp.ne.s32.totalorder %s109, %s110
    %p122 = scmp.eq.s32.totalorder %s16, 3
    %p123 = por %p121, %p122
    %p125 = scmp.ne.s32.totalorder %s110, %s124
    %p126 = scmp.eq.s32.totalorder %s16, 0
    %p127 = por %p125, %p126
    %p128 = scmp.le.s32.totalorder 1, %s10
    %p129 = scmp.lt.s32.totalorder %s10, 5
    %p130 = pnand %p128, %p129
    %p131 = pneg %p130
    // Predicated region
    $region9: #{rnn_predict.1} parent=5 // pred_check
      _
    $region10: #{rnn_predict.1} parent=5 // pred_check_branch
      %133 = sbr.rel (%p130) target = $region12
    $region11: #{rnn_predict.1} parent=5 // pred_region
      %s134 = ssub.s32 %s10, 1
      // Predicated region
      $region13: #{rnn_predict.1} parent=11 // pred_check
        %p135 = pneg %p57
      $region14: #{rnn_predict.1} parent=11 // pred_check_branch
        %137 = sbr.rel (%p135) target = $region16
      $region15: #{rnn_predict.1} parent=11 // pred_region
        _
      $region16: #{rnn_predict.1} parent=11 // pred_fallthru
        _
      // Predicated region
      $region17: #{rnn_predict.1} parent=11 // pred_check
        %p138 = pneg %p78
      $region18: #{rnn_predict.1} parent=11 // pred_check_branch
        %140 = sbr.rel (%p138) target = $region20
      $region19: #{rnn_predict.1} parent=11 // pred_region
        _
      $region20: #{rnn_predict.1} parent=11 // pred_fallthru
        _
      // Predicated region
      $region21: #{rnn_predict.1} parent=11 // pred_check
        %p141 = pneg %p99
      $region22: #{rnn_predict.1} parent=11 // pred_check_branch
        %143 = sbr.rel (%p141) target = $region24
      $region23: #{rnn_predict.1} parent=11 // pred_region
        _
      $region24: #{rnn_predict.1} parent=11 // pred_fallthru
        _
    $region12: #{rnn_predict.1} parent=5 // pred_fallthru
      _
    %p144 = scmp.lt.s32.totalorder %s10, 4
    // Predicated region
    $region25: #{rnn_predict.1} parent=5 // pred_check
      %p145 = pneg %p144
    $region26: #{rnn_predict.1} parent=5 // pred_check_branch
      %147 = sbr.rel (%p145) target = $region28
    $region27: #{rnn_predict.1} parent=5 // pred_region
      // Predicated region
      $region29: #{rnn_predict.1} parent=27 // pred_check
        %p148 = pneg %p30
      $region30: #{rnn_predict.1} parent=27 // pred_check_branch
        %150 = sbr.rel (%p148) target = $region32
      $region31: #{rnn_predict.1} parent=27 // pred_region
        %p151 = scmp.lt.s32.totalorder %s10, 3
        %s152 = scalar_select %p151, %s10, 3
        %s153 = smul.addr %s152, 8
        %s154 = scalar_lea.vmem %s0, %s153
      $region32: #{rnn_predict.1} parent=27 // pred_fallthru
        _
    $region28: #{rnn_predict.1} parent=5 // pred_fallthru
      _
    %p155 = scmp.le.s32.totalorder 1, %s10
    %p156 = scmp.lt.s32.totalorder %s10, 5
    %p157 = pnand %p155, %p156
    %p158 = pneg %p157
    // Predicated region
    $region33: #{rnn_predict.1} parent=5 // pred_check
      _
    $region34: #{rnn_predict.1} parent=5 // pred_check_branch
      %160 = sbr.rel (%p157) target = $region36
    $region35: #{rnn_predict.1} parent=5 // pred_region
      %s161 = ssub.s32 %s10, 1
      %p162 = scmp.lt.s32.totalorder %s15, 3
      %s163 = scalar_select %p162, %s15, 3
      %s164 = smul.addr %s163, 8
      %s165 = scalar_lea.vmem %s0, %s164
      %p166 = pneg %p36
      %p167 = pneg %p33
      %p168 = pneg %p57
      %p169 = pneg %p54
      %p170 = pneg %p78
      %p171 = pneg %p75
      %p172 = pneg %p99
      %p173 = pneg %p96
      %p174 = pneg %p120
      %p175 = pneg %p117
      %p176 = scmp.lt.s32.totalorder %s15, 3
      %s177 = scalar_select %p176, %s15, 3
      %s178 = smul.addr %s177, 8
      %s179 = scalar_lea.vmem %s0, %s178
      %p181 = scmp.eq.s32.totalorder %s15, 0
      // Predicated region
      $region37: #{rnn_predict.1} parent=35 // pred_check
        %p182 = pneg %p181
      $region38: #{rnn_predict.1} parent=35 // pred_check_branch
        %184 = sbr.rel (%p182) target = $region40
      $region39: #{rnn_predict.1} parent=35 // pred_region
        %185 = vst [vmem:[%s4] sm:$0xff] 0.0
      $region40: #{rnn_predict.1} parent=35 // pred_fallthru
        _
      %v186 = vld [vmem:[%s179] sm:$0xff]
      %v187 = vpack.c.bf16 %v186, %v186
      %v188 = vld [vmem:[%s4] sm:$0xff]
      %v189 = vpack.c.bf16 %v188, %v188
      %v190 = vld [vmem:[%s1] sm:$0xf]
      %v191 = vld [vmem:[%s1 + $0x4] sm:$0xf]
      %v192 = vld [vmem:[%s2] sm:$0xf]
      %v193 = vld [vmem:[%s2 + $0x4] sm:$0xf]
      %v194 = vld [vmem:[%s2 + $0x8] sm:$0xf]
      %v195 = vld [vmem:[%s2 + $0xc] sm:$0xf]
      %v200 = vunpack.c.l.b16 %v192
      %v201 = vunpack.c.l.b16 %v193
      %v202 = vunpack.c.l.b16 %v194
      %v203 = vunpack.c.l.b16 %v195
      %v204 = vpack.c.b16 %v201, %v200
      %v205 = vpack.c.b16 %v203, %v202
      %vm208 = vcmask 261120
      %v210 = vsel %vm208, %v189, 0
      %212 = vmatprep.subr.bf16.mxu0 0
      %213 = vmatpush1.bf16.msra.mxu0 0
      %214 = vmatprep.subr.bf16.mxu0 0
      %215 = vmatpush1.bf16.msra.mxu0 0
      %216 = vmatprep.subr.bf16.mxu0 0
      %217 = vmatpush1.bf16.msra.mxu0 0
      %218 = vmatprep.subr.bf16.mxu0 0
      %219 = vmatpush1.bf16.msra.mxu0 0
      %220 = vmatprep.subr.bf16.mxu0 0
      %221 = vmatpush1.bf16.msra.mxu0 0
      %222 = vmatprep.subr.bf16.mxu0 0
      %223 = vmatpush1.bf16.msra.mxu0 0
      %224 = vmatprep.subr.bf16.mxu0 0
      %225 = vmatpush1.bf16.msra.mxu0 %v205
      %226 = vmatprep.subr.bf16.mxu0 0
      %227 = vmatpush1.bf16.msra.mxu0 %v204
      %228 = vmatprep.subr.bf16.mxu0 0
      %229 = vmatpush2.bf16.msra.mxu0 0
      %230 = vmatprep.subr.bf16.mxu0 0
      %231 = vmatpush2.bf16.msra.mxu0 0
      %232 = vmatprep.subr.bf16.mxu0 0
      %233 = vmatpush2.bf16.msra.mxu0 0
      %234 = vmatprep.subr.bf16.mxu0 0
      %235 = vmatpush2.bf16.msra.mxu0 0
      %236 = vmatprep.subr.bf16.mxu0 0
      %237 = vmatpush2.bf16.msra.mxu0 0
      %238 = vmatprep.subr.bf16.mxu0 0
      %239 = vmatpush2.bf16.msra.mxu0 0
      %240 = vmatprep.subr.bf16.mxu0 0
      %241 = vmatpush2.bf16.msra.mxu0 0
      %242 = vmatprep.subr.bf16.mxu0 0
      %243 = vmatpush2.bf16.msra.mxu0 0
      %244 = vmatprep.mubr.bf16.mxu0 0
      %245 = vmatmul.mubr.bf16.gmra.mxu0 %v210
      %v246 = vpop.f32.mrf.mxu0
      %v247 = vadd.f32 0.0, %v246
      %v248 = vpop.f32.mrf.mxu0
      %v249 = vpop.f32.mrf.mxu0
      %v250 = vpop.f32.mrf.mxu0
      %251 = vdwg.mxu0
      %v254 = vunpack.c.l.b16 %v190
      %v255 = vunpack.c.l.b16 %v191
      %v256 = vpack.c.b16 %v255, %v254
      %vm258 = vcmask 130048
      %v260 = vsel %vm258, %v187, 0
      %262 = vmatprep.subr.bf16.mxu0 0
      %263 = vmatpush1.bf16.msra.mxu0 0
      %264 = vmatprep.subr.bf16.mxu0 0
      %265 = vmatpush1.bf16.msra.mxu0 0
      %266 = vmatprep.subr.bf16.mxu0 0
      %267 = vmatpush1.bf16.msra.mxu0 0
      %268 = vmatprep.subr.bf16.mxu0 0
      %269 = vmatpush1.bf16.msra.mxu0 0
      %270 = vmatprep.subr.bf16.mxu0 0
      %271 = vmatpush1.bf16.msra.mxu0 0
      %272 = vmatprep.subr.bf16.mxu0 0
      %273 = vmatpush1.bf16.msra.mxu0 0
      %274 = vmatprep.subr.bf16.mxu0 0
      %275 = vmatpush1.bf16.msra.mxu0 0
      %276 = vmatprep.subr.bf16.mxu0 0
      %277 = vmatpush1.bf16.msra.mxu0 %v256
      %278 = vmatprep.subr.bf16.mxu0 0
      %279 = vmatpush2.bf16.msra.mxu0 0
      %280 = vmatprep.subr.bf16.mxu0 0
      %281 = vmatpush2.bf16.msra.mxu0 0
      %282 = vmatprep.subr.bf16.mxu0 0
      %283 = vmatpush2.bf16.msra.mxu0 0
      %284 = vmatprep.subr.bf16.mxu0 0
      %285 = vmatpush2.bf16.msra.mxu0 0
      %286 = vmatprep.subr.bf16.mxu0 0
      %287 = vmatpush2.bf16.msra.mxu0 0
      %288 = vmatprep.subr.bf16.mxu0 0
      %289 = vmatpush2.bf16.msra.mxu0 0
      %290 = vmatprep.subr.bf16.mxu0 0
      %291 = vmatpush2.bf16.msra.mxu0 0
      %292 = vmatprep.subr.bf16.mxu0 0
      %293 = vmatpush2.bf16.msra.mxu0 0
      %294 = vmatprep.mubr.bf16.mxu0 0
      %295 = vmatmul.mubr.bf16.gmra.mxu0 %v260
      %v296 = vpop.f32.mrf.mxu0
      %v297 = vadd.f32 %v247, %v296
      %v298 = vpop.f32.mrf.mxu0
      %v299 = vpop.f32.mrf.mxu0
      %v300 = vpop.f32.mrf.mxu0
      %301 = vdwg.mxu0
      %v302 = vld [vmem:[%s3] sm:$0x1]
      %v304 = vlaneseq
      %v305 = vshrl.u32 %v304, 7
      %v306 = vsub.s32 0, %v305
      %v307 = vrot.slane %v302, %v306
      %v309 = vadd.f32 %v297, %v307
      %310 = vst [vmem:[%s4] sm:$0xff] %v309
      %p311 = scmp.eq.s32.totalorder %s15, 3
      // Predicated region
      $region41: #{rnn_predict.1} parent=35 // pred_check
        %p312 = pneg %p311
      $region42: #{rnn_predict.1} parent=35 // pred_check_branch
        %314 = sbr.rel (%p312) target = $region44
      $region43: #{rnn_predict.1} parent=35 // pred_region
        %v315 = vlaneseq
        %v316 = vand.u32 %v315, 127
        %vm317 = vcmp.ge.s32.totalorder %v316, 32
        %vm318 = vcmp.lt.s32.totalorder %v316, 40
        %vm319 = vmand %vm317, %vm318
        %v320 = vsel %vm319, %v309, -inf
        %321 = vmax.xlane.f32.xlu0 %v320
        %v322 = vpop.xlane.xlu0 %321
        %v323 = vsub.f32 %v320, %v322
        %v324 = vmul.f32 %v323, 1.442695
        %v325 = vpow.pop %v324
        %326 = vadd.xlane.f32.xlu0 %v325
        %v327 = vpop.xlane.xlu0 %326
        %v328 = vlog2.pop %v327
        %v329 = vmul.f32 %v328, 0.6931472
        %v330 = vsub.f32 %v323, %v329
        %v331 = vsel %vm319, %v330, %v309
        %332 = vst [vmem:[%s4] sm:$0xff] %v331
      $region44: #{rnn_predict.1} parent=35 // pred_fallthru
        _
      // Predicated region
      $region45: #{rnn_predict.1} parent=35 // pred_check
        %p333 = pneg %p117
      $region46: #{rnn_predict.1} parent=35 // pred_check_branch
        %335 = sbr.rel (%p333) target = $region48
      $region47: #{rnn_predict.1} parent=35 // pred_region
        _
      $region48: #{rnn_predict.1} parent=35 // pred_fallthru
        _
      // Predicated region
      $region49: #{rnn_predict.1} parent=35 // pred_check
        %p336 = pneg %p117
      $region50: #{rnn_predict.1} parent=35 // pred_check_branch
        %338 = sbr.rel (%p336) target = $region52
      $region51: #{rnn_predict.1} parent=35 // pred_region
        _
      $region52: #{rnn_predict.1} parent=35 // pred_fallthru
        _
    $region36: #{rnn_predict.1} parent=5 // pred_fallthru
      _
    %p339 = scmp.le.s32.totalorder 2, %s10
    // Predicated region
    $region53: #{rnn_predict.1} parent=5 // pred_check
      %p340 = pneg %p339
    $region54: #{rnn_predict.1} parent=5 // pred_check_branch
      %342 = sbr.rel (%p340) target = $region56
    $region55: #{rnn_predict.1} parent=5 // pred_region
      %s343 = ssub.s32 %s10, 2
    $region56: #{rnn_predict.1} parent=5 // pred_fallthru
      _
  $region6: #{rnn_predict.1} parent=0 // loop_footer
    %s14 = sadd.s32 1, %s10
  $region7: #{rnn_predict.1} parent=0 // loop_footer_branch
    %9 = sbr.rel target = $region3
  $region8: #{rnn_predict.1} parent=0 // loop_exit
    _

</llo_original>
